<compile_context>
chip_gen: v5e
topology: v5e:2x2
jax: 0.10.0
libtpu: 0.0.40
codegen_flags: <defaults>
</compile_context>

<pallas_src>
import functools
import math

import jax
import jax.numpy as jnp
from jax.experimental import pallas as pl
from jax.experimental.pallas import tpu as pltpu

_MIN_VMEM_LIMIT = 16 * 1024 * 1024


@functools.lru_cache(maxsize=1)
def _vmem_capacity_bytes():
    """Physical per-core VMEM (v5e/v6e: 128 MiB, v7x: 64 MiB per TC)."""
    try:
        return int(pltpu.get_tpu_info().vmem_capacity_bytes)
    except Exception:
        return 64 * 1024 * 1024      # conservative fallback (v7x per-TC)


# ---------------------------------------------------------------------------
# Kernels
# ---------------------------------------------------------------------------
def _topdown_lstm_kernel(h0_ref, xb_ref, xt_ref, w_ref, b_ref, c0_ref,
                         h1_ref, c1_ref):
    """One hidden tile of a single TopDown-LSTM step.

    h0_ref : (B, H)        resident activations (prev hidden)
    xb_ref : (B, I)        resident activations (bottom input)
    xt_ref : (B, H)        resident activations (top input)
    w_ref  : (K, 4*th)     streamed weight tile, K = H + I + H, rows stacked
                           [W_hh ; W_bh ; W_th], columns [f_j|i_j|o_j|g_j]
    b_ref  : (1, 4*th)     f32 bias tile, same column order
    c0_ref : (B, th)       previous cell-state tile
    h1_ref : (B, th)       next hidden-state tile (output)
    c1_ref : (B, th)       next cell-state tile (output)
    """
    th = c0_ref.shape[1]
    hidden = h0_ref.shape[1]
    inp = xb_ref.shape[1]
    mm = w_ref.dtype

    # Three accumulating MXU matmuls into one f32 value (weights are already
    # row-stacked along K) — avoids a wrapper-side concat/cast HBM pass.
    gates = jnp.dot(h0_ref[...].astype(mm), w_ref[0:hidden, :],
                    preferred_element_type=jnp.float32)
    gates = gates + jnp.dot(xb_ref[...].astype(mm),
                            w_ref[hidden:hidden + inp, :],
                            preferred_element_type=jnp.float32)
    gates = gates + jnp.dot(xt_ref[...].astype(mm),
                            w_ref[hidden + inp:, :],
                            preferred_element_type=jnp.float32)
    gates = gates + b_ref[...]

    f = gates[:, 0 * th:1 * th]
    i = gates[:, 1 * th:2 * th]
    o = gates[:, 2 * th:3 * th]
    g = gates[:, 3 * th:4 * th]

    c0 = c0_ref[...].astype(jnp.float32)
    c1 = jax.nn.sigmoid(f) * c0 + jax.nn.sigmoid(i) * jnp.tanh(g)
    h1 = jax.nn.sigmoid(o) * jnp.tanh(c1)

    h1_ref[...] = h1.astype(h1_ref.dtype)
    c1_ref[...] = c1.astype(c1_ref.dtype)


def _topdown_lstm_seq_kernel(xb_ref, xt_ref, w_ref, b_ref, h0_ref, c0_ref,
                             hseq_ref, cseq_ref, h_sc, c_sc):
    """One timestep with VMEM-resident weights; h/c carried in f32 scratch.

    xb_ref : (B, I)      bottom input at timestep t (streamed)
    xt_ref : (B, H)      top input at timestep t (streamed)
    w_ref  : (K, 4H)     full fused weight, resident across the time grid
    b_ref  : (1, 4H)     f32 bias, resident
    h0_ref / c0_ref : (B, H) initial states (resident)
    hseq_ref / cseq_ref : (B, H) per-step outputs
    h_sc / c_sc : (B, H) f32 VMEM scratch carrying the recurrent state
    """
    hidden = h0_ref.shape[1]
    inp = xb_ref.shape[1]
    mm = w_ref.dtype

    @pl.when(pl.program_id(0) == 0)
    def _():
        h_sc[...] = h0_ref[...].astype(jnp.float32)
        c_sc[...] = c0_ref[...].astype(jnp.float32)

    gates = jnp.dot(h_sc[...].astype(mm), w_ref[0:hidden, :],
                    preferred_element_type=jnp.float32)
    gates = gates + jnp.dot(xb_ref[...].astype(mm),
                            w_ref[hidden:hidden + inp, :],
                            preferred_element_type=jnp.float32)
    gates = gates + jnp.dot(xt_ref[...].astype(mm),
                            w_ref[hidden + inp:, :],
                            preferred_element_type=jnp.float32)
    gates = gates + b_ref[...]

    f = gates[:, 0 * hidden:1 * hidden]
    i = gates[:, 1 * hidden:2 * hidden]
    o = gates[:, 2 * hidden:3 * hidden]
    g = gates[:, 3 * hidden:4 * hidden]

    c1 = jax.nn.sigmoid(f) * c_sc[...] + jax.nn.sigmoid(i) * jnp.tanh(g)
    h1 = jax.nn.sigmoid(o) * jnp.tanh(c1)

    h_sc[...] = h1
    c_sc[...] = c1
    hseq_ref[...] = h1.astype(hseq_ref.dtype)
    cseq_ref[...] = c1.astype(cseq_ref.dtype)


# ---------------------------------------------------------------------------
# One-time parameter preparation (setup time, not per call)
# ---------------------------------------------------------------------------
def pick_tile_h(hidden_size, input_size, matmul_dtype=jnp.bfloat16,
                vmem_capacity=None):
    """Largest tile_h (multiple of 128 dividing H) whose double-buffered
    (K, 4*tile_h) weight block fits in ~55% of this generation's VMEM.

    Non-128-multiple H falls back to a single tile — demo-only path, not
    representative of production (gate slices become lane-unaligned).
    """
    if vmem_capacity is None:
        vmem_capacity = _vmem_capacity_bytes()
    if hidden_size % 128 != 0:
        return hidden_size
    k_dim = 2 * hidden_size + input_size
    mm_bytes = jnp.dtype(matmul_dtype).itemsize
    weight_budget = int(0.55 * vmem_capacity)    # double-buffered weight stream
    best = 128
    for cand in range(128, hidden_size + 1, 128):
        if hidden_size % cand:
            continue
        if 2 * k_dim * 4 * cand * mm_bytes <= weight_budget:
            best = cand
    return best


def fuse_topdown_params(weight_bh, weight_hh, weight_th, bias, *,
                        tile_h, matmul_dtype=jnp.bfloat16):
    """Fuse the three weight matrices and reorder gate columns per hidden tile.

    Returns:
      w_fused : (H + I + H, 4H) in matmul_dtype, rows [W_hh ; W_bh ; W_th];
                columns reordered so hidden tile j owns [f_j | i_j | o_j | g_j].
      b_fused : (1, 4H) float32 bias with the same column reordering.
    """
    input_size, four_h = weight_bh.shape
    hidden_size = four_h // 4
    assert weight_hh.shape == (hidden_size, 4 * hidden_size)
    assert weight_th.shape == (hidden_size, 4 * hidden_size)
    assert hidden_size % tile_h == 0
    n_tiles = hidden_size // tile_h
    k_dim = hidden_size + input_size + hidden_size

    w = jnp.concatenate([weight_hh, weight_bh, weight_th], axis=0)      # (K, 4H)
    w = (w.reshape(k_dim, 4, n_tiles, tile_h)
          .transpose(0, 2, 1, 3)
          .reshape(k_dim, 4 * hidden_size))
    b = (bias.reshape(4, n_tiles, tile_h)
             .transpose(1, 0, 2)
             .reshape(1, 4 * hidden_size))
    return w.astype(matmul_dtype), b.astype(jnp.float32)


# ---------------------------------------------------------------------------
# Per-call wrappers
# ---------------------------------------------------------------------------
@functools.partial(jax.jit, static_argnames=("tile_h",))
def topdown_lstm_cell(input_bottom, input_top, h_0, c_0, w_fused, b_fused, *,
                      tile_h):
    """Single TopDown-LSTM step, hidden dimension tiled over a parallel grid."""
    batch, hidden = h_0.shape
    input_size = input_bottom.shape[1]
    k_dim = w_fused.shape[0]
    assert k_dim == 2 * hidden + input_size
    assert hidden % tile_h == 0
    n_tiles = hidden // tile_h

    mm_bytes = jnp.dtype(w_fused.dtype).itemsize
    act_bytes = jnp.dtype(h_0.dtype).itemsize

    # Pad batch to a sublane multiple (cheap; keeps output stores unmasked).
    pad_to = 8
    b_extra = (-batch) % pad_to
    bp = batch + b_extra
    if b_extra:
        padf = lambda a: jnp.pad(a, ((0, b_extra), (0, 0)))
        xb_p, xt_p, h0_p, c0_p = (padf(input_bottom), padf(input_top),
                                  padf(h_0), padf(c_0))
    else:
        xb_p, xt_p, h0_p, c0_p = input_bottom, input_top, h_0, c_0

    # Direct double-buffered footprint + 15% margin (no double-hedging),
    # capped at 90% of this generation's physical VMEM.
    resident_in = bp * (hidden + input_size + hidden) * act_bytes
    per_tile_in = (k_dim * 4 * tile_h * mm_bytes     # weight tile
                   + 4 * tile_h * 4                  # bias tile (f32)
                   + bp * tile_h * act_bytes)        # c0 tile
    per_tile_out = 2 * bp * tile_h * act_bytes       # h1 + c1 tiles
    gates_live = bp * 4 * tile_h * 4                 # f32 gates intermediate
    footprint = 2 * resident_in + 2 * (per_tile_in + per_tile_out) + gates_live
    cap = _vmem_capacity_bytes()
    vmem_limit = int(min(max(int(footprint * 1.15), _MIN_VMEM_LIMIT),
                         int(cap * 0.9)))

    h1, c1 = pl.pallas_call(
        _topdown_lstm_kernel,
        out_shape=(
            jax.ShapeDtypeStruct((bp, hidden), h_0.dtype),
            jax.ShapeDtypeStruct((bp, hidden), c_0.dtype),
        ),
        grid=(n_tiles,),
        in_specs=[
            pl.BlockSpec((bp, hidden), lambda j: (0, 0)),         # h_0 (resident)
            pl.BlockSpec((bp, input_size), lambda j: (0, 0)),     # x_bottom (resident)
            pl.BlockSpec((bp, hidden), lambda j: (0, 0)),         # x_top (resident)
            pl.BlockSpec((k_dim, 4 * tile_h), lambda j: (0, j)),  # weight tile (streamed)
            pl.BlockSpec((1, 4 * tile_h), lambda j: (0, j)),      # bias tile
            pl.BlockSpec((bp, tile_h), lambda j: (0, j)),         # c_0 tile
        ],
        out_specs=(
            pl.BlockSpec((bp, tile_h), lambda j: (0, j)),         # h_1 tile
            pl.BlockSpec((bp, tile_h), lambda j: (0, j)),         # c_1 tile
        ),
        compiler_params=pltpu.CompilerParams(
            dimension_semantics=("parallel",),
            vmem_limit_bytes=vmem_limit,
        ),
    )(h0_p, xb_p, xt_p, w_fused, b_fused, c0_p)

    if b_extra:
        h1, c1 = h1[:batch], c1[:batch]
    return h1, c1


@jax.jit
def topdown_lstm_sequence(xb_seq, xt_seq, h_0, c_0, w_fused, b_fused):
    """Multi-timestep TopDown-LSTM: weights resident in VMEM (one DMA per
    sequence), h/c carried in f32 VMEM scratch across an 'arbitrary' time grid.

    Requires w_fused built with tile_h == hidden_size (no column reorder).
    """
    seq_len, batch, input_size = xb_seq.shape
    hidden = h_0.shape[1]
    k_dim = w_fused.shape[0]
    assert k_dim == 2 * hidden + input_size

    mm_bytes = jnp.dtype(w_fused.dtype).itemsize
    act_bytes = jnp.dtype(h_0.dtype).itemsize

    w_bytes = k_dim * 4 * hidden * mm_bytes
    resident = (2 * w_bytes                            # weight (pipeline buffers)
                + 2 * 4 * hidden * 4                   # bias
                + 2 * 2 * batch * hidden * act_bytes   # h0/c0
                + 2 * batch * hidden * 4               # h/c scratch
                + batch * 4 * hidden * 4)              # f32 gates
    per_step = (2 * batch * (input_size + hidden) * act_bytes   # xb/xt, 2-buffered
                + 2 * 2 * batch * hidden * act_bytes)           # h/c out blocks
    footprint = resident + per_step
    cap = _vmem_capacity_bytes()
    if footprint * 1.15 > cap * 0.9:
        # TODO(synk): tiled-time variant (loop time inside each hidden weight tile).
        raise ValueError("fused weights do not fit resident in VMEM; use "
                         "per-step topdown_lstm_cell (hidden-tiled) instead")
    vmem_limit = int(min(max(int(footprint * 1.15), _MIN_VMEM_LIMIT),
                         int(cap * 0.9)))

    h_seq, c_seq = pl.pallas_call(
        _topdown_lstm_seq_kernel,
        out_shape=(
            jax.ShapeDtypeStruct((seq_len, batch, hidden), h_0.dtype),
            jax.ShapeDtypeStruct((seq_len, batch, hidden), c_0.dtype),
        ),
        grid=(seq_len,),
        in_specs=[
            pl.BlockSpec((None, batch, input_size), lambda t: (t, 0, 0)),  # xb[t]
            pl.BlockSpec((None, batch, hidden), lambda t: (t, 0, 0)),      # xt[t]
            pl.BlockSpec((k_dim, 4 * hidden), lambda t: (0, 0)),           # W (resident)
            pl.BlockSpec((1, 4 * hidden), lambda t: (0, 0)),               # bias (resident)
            pl.BlockSpec((batch, hidden), lambda t: (0, 0)),               # h_0
            pl.BlockSpec((batch, hidden), lambda t: (0, 0)),               # c_0
        ],
        out_specs=(
            pl.BlockSpec((None, batch, hidden), lambda t: (t, 0, 0)),
            pl.BlockSpec((None, batch, hidden), lambda t: (t, 0, 0)),
        ),
        scratch_shapes=[pltpu.VMEM((batch, hidden), jnp.float32),
                        pltpu.VMEM((batch, hidden), jnp.float32)],
        compiler_params=pltpu.CompilerParams(
            dimension_semantics=("arbitrary",),
            vmem_limit_bytes=vmem_limit,
        ),
    )(xb_seq, xt_seq, w_fused, b_fused, h_0, c_0)
    return h_seq, c_seq


# ---------------------------------------------------------------------------
# Reference & test harness
# ---------------------------------------------------------------------------
def _reference(input_bottom, input_top, h_0, c_0, w_bh, w_hh, w_th, bias):
    gates = h_0 @ w_hh + bias[None, :] + input_bottom @ w_bh + input_top @ w_th
    hidden = h_0.shape[1]
    f, i, o, g = (gates[:, k * hidden:(k + 1) * hidden] for k in range(4))
    c_1 = jax.nn.sigmoid(f) * c_0 + jax.nn.sigmoid(i) * jnp.tanh(g)
    h_1 = jax.nn.sigmoid(o) * jnp.tanh(c_1)
    return h_1, c_1


def _reference_seq(xb_seq, xt_seq, h_0, c_0, w_bh, w_hh, w_th, bias):
    h, c = h_0, c_0
    hs, cs = [], []
    for t in range(xb_seq.shape[0]):
        h, c = _reference(xb_seq[t], xt_seq[t], h, c, w_bh, w_hh, w_th, bias)
        hs.append(h)
        cs.append(c)
    return jnp.stack(hs), jnp.stack(cs)


def _make_params(key, input_size, hidden_size):
    # reset_parameters(): uniform(-stdv, stdv).  The module zeros the bias;
    # we use a nonzero bias here to exercise the bias column-reorder path.
    k_wb, k_wh, k_wt, k_b = jax.random.split(key, 4)
    stdv = 1.0 / math.sqrt(hidden_size)
    weight_bh = jax.random.uniform(k_wb, (input_size, 4 * hidden_size),
                                   jnp.float32, -stdv, stdv)
    weight_hh = jax.random.uniform(k_wh, (hidden_size, 4 * hidden_size),
                                   jnp.float32, -stdv, stdv)
    weight_th = jax.random.uniform(k_wt, (hidden_size, 4 * hidden_size),
                                   jnp.float32, -stdv, stdv)
    bias = jax.random.uniform(k_b, (4 * hidden_size,),
                              jnp.float32, -stdv, stdv)
    return weight_bh, weight_hh, weight_th, bias


def _run_case(key, batch, input_size, hidden_size, tile_h, matmul_dtype,
              atol, rtol):
    k_p, k_xb, k_xt, k_h, k_c = jax.random.split(key, 5)
    w_bh, w_hh, w_th, bias = _make_params(k_p, input_size, hidden_size)
    xb = jax.random.normal(k_xb, (batch, input_size), jnp.float32)
    xt = jax.random.normal(k_xt, (batch, hidden_size), jnp.float32)
    h0 = jax.random.normal(k_h, (batch, hidden_size), jnp.float32)
    c0 = jax.random.normal(k_c, (batch, hidden_size), jnp.float32)

    w_f, b_f = fuse_topdown_params(w_bh, w_hh, w_th, bias,
                                   tile_h=tile_h, matmul_dtype=matmul_dtype)
    h1, c1 = topdown_lstm_cell(xb, xt, h0, c0, w_f, b_f, tile_h=tile_h)
    jax.block_until_ready((h1, c1))

    h_ref, c_ref = _reference(xb, xt, h0, c0, w_bh, w_hh, w_th, bias)
    assert jnp.allclose(h1, h_ref, atol=atol, rtol=rtol), "h mismatch"
    assert jnp.allclose(c1, c_ref, atol=atol, rtol=rtol), "c mismatch"


def _run_seq_case(key, seq_len, batch, input_size, hidden_size, matmul_dtype,
                  atol, rtol):
    k_p, k_xb, k_xt, k_h, k_c = jax.random.split(key, 5)
    w_bh, w_hh, w_th, bias = _make_params(k_p, input_size, hidden_size)
    xb = jax.random.normal(k_xb, (seq_len, batch, input_size), jnp.float32)
    xt = jax.random.normal(k_xt, (seq_len, batch, hidden_size), jnp.float32)
    h0 = jax.random.normal(k_h, (batch, hidden_size), jnp.float32)
    c0 = jax.random.normal(k_c, (batch, hidden_size), jnp.float32)

    # Sequence kernel holds the full (K, 4H) weight resident: fuse with tile_h=H.
    w_f, b_f = fuse_topdown_params(w_bh, w_hh, w_th, bias,
                                   tile_h=hidden_size, matmul_dtype=matmul_dtype)
    h_seq, c_seq = topdown_lstm_sequence(xb, xt, h0, c0, w_f, b_f)
    jax.block_until_ready((h_seq, c_seq))

    h_ref, c_ref = _reference_seq(xb, xt, h0, c0, w_bh, w_hh, w_th, bias)
    assert jnp.allclose(h_seq, h_ref, atol=atol, rtol=rtol), "seq h mismatch"
    assert jnp.allclose(c_seq, c_ref, atol=atol, rtol=rtol), "seq c mismatch"


if __name__ == "__main__":
    root = jax.random.PRNGKey(0)
    keys = jax.random.split(root, 6)

    # Single-step, small demo shapes (single hidden tile; demo-only layout).
    batch, input_size, hidden_size = 8, 16, 32
    th = pick_tile_h(hidden_size, input_size)          # 32 (demo fallback)
    _run_case(keys[0], batch, input_size, hidden_size, th,
              jnp.float32, atol=1e-4, rtol=1e-4)       # f32 path
    _run_case(keys[1], batch, input_size, hidden_size, th,
              jnp.bfloat16, atol=2e-2, rtol=2e-2)      # bf16 MXU path

    # Single-step, lane-aligned hidden-tiled path (2 tiles of 128, parallel grid).
    batch2, input_size2, hidden_size2 = 8, 64, 256
    assert pick_tile_h(hidden_size2, input_size2) == 256   # VMEM-aware pick
    _run_case(keys[2], batch2, input_size2, hidden_size2, 128,
              jnp.float32, atol=1e-4, rtol=1e-4)
    _run_case(keys[3], batch2, input_size2, hidden_size2, 128,
              jnp.bfloat16, atol=2e-2, rtol=2e-2)

    # Multi-timestep path: weights resident in VMEM, one weight DMA per sequence.
    _run_seq_case(keys[4], seq_len=4, batch=8, input_size=64, hidden_size=128,
                  matmul_dtype=jnp.float32, atol=1e-4, rtol=1e-4)
    _run_seq_case(keys[5], seq_len=4, batch=8, input_size=64, hidden_size=128,
                  matmul_dtype=jnp.bfloat16, atol=5e-2, rtol=5e-2)

    print("KERNEL_OK")
</pallas_src>

<mosaic_0001>
module attributes {stable_mosaic.version = 11 : i64} {
  func.func @_topdown_lstm_kernel(%arg0: i32, %arg1: memref<8x32xf32, #tpu.memory_space<vmem>>, %arg2: memref<8x16xf32, #tpu.memory_space<vmem>>, %arg3: memref<8x32xf32, #tpu.memory_space<vmem>>, %arg4: memref<80x128xf32, #tpu.memory_space<vmem>>, %arg5: memref<1x128xf32, #tpu.memory_space<vmem>>, %arg6: memref<8x32xf32, #tpu.memory_space<vmem>>, %arg7: memref<8x32xf32, #tpu.memory_space<vmem>>, %arg8: memref<8x32xf32, #tpu.memory_space<vmem>>) attributes {dimension_semantics = [#tpu.dimension_semantics<parallel>], iteration_bounds = array<i64: 1>, scalar_prefetch = 0 : i64, scratch_operands = 0 : i64, tpu.core_type = #tpu.core_type<tc>, window_params = [{pipeline_mode = #tpu.pipeline_mode<synchronous>, transform_indices = @transform_0, window_bounds = array<i64: 8, 32>}, {pipeline_mode = #tpu.pipeline_mode<synchronous>, transform_indices = @transform_1, window_bounds = array<i64: 8, 16>}, {pipeline_mode = #tpu.pipeline_mode<synchronous>, transform_indices = @transform_2, window_bounds = array<i64: 8, 32>}, {transform_indices = @transform_3, window_bounds = array<i64: 80, 128>}, {transform_indices = @transform_4, window_bounds = array<i64: 1, 128>}, {transform_indices = @transform_5, window_bounds = array<i64: 8, 32>}, {transform_indices = @transform_6, window_bounds = array<i64: 8, 32>}, {transform_indices = @transform_7, window_bounds = array<i64: 8, 32>}]} {
    %c0 = arith.constant 0 : index
    %c0_0 = arith.constant 0 : index
    %0 = vector.load %arg1[%c0, %c0_0] : memref<8x32xf32, #tpu.memory_space<vmem>>, vector<8x32xf32>
    %c0_1 = arith.constant 0 : index
    %c0_2 = arith.constant 0 : index
    %1 = vector.load %arg4[%c0_1, %c0_2] : memref<80x128xf32, #tpu.memory_space<vmem>>, vector<32x128xf32>
    %cst = arith.constant dense<0.000000e+00> : vector<8x128xf32>
    %2 = tpu.matmul %0, %1, %cst {dimension_numbers = #tpu.dot_dimension_numbers<[1], [0], [0], [1], [0, 0, 1, 1], [], []>} : vector<8x32xf32>, vector<32x128xf32>, vector<8x128xf32> -> vector<8x128xf32>
    %c0_3 = arith.constant 0 : index
    %c0_4 = arith.constant 0 : index
    %3 = vector.load %arg2[%c0_3, %c0_4] : memref<8x16xf32, #tpu.memory_space<vmem>>, vector<8x16xf32>
    %c32 = arith.constant 32 : index
    %c0_5 = arith.constant 0 : index
    %4 = vector.load %arg4[%c32, %c0_5] : memref<80x128xf32, #tpu.memory_space<vmem>>, vector<16x128xf32>
    %cst_6 = arith.constant dense<0.000000e+00> : vector<8x128xf32>
    %5 = tpu.matmul %3, %4, %cst_6 {dimension_numbers = #tpu.dot_dimension_numbers<[1], [0], [0], [1], [0, 0, 1, 1], [], []>} : vector<8x16xf32>, vector<16x128xf32>, vector<8x128xf32> -> vector<8x128xf32>
    %6 = arith.addf %2, %5 : vector<8x128xf32>
    %c0_7 = arith.constant 0 : index
    %c0_8 = arith.constant 0 : index
    %7 = vector.load %arg3[%c0_7, %c0_8] : memref<8x32xf32, #tpu.memory_space<vmem>>, vector<8x32xf32>
    %c48 = arith.constant 48 : index
    %c0_9 = arith.constant 0 : index
    %8 = vector.load %arg4[%c48, %c0_9] : memref<80x128xf32, #tpu.memory_space<vmem>>, vector<32x128xf32>
    %cst_10 = arith.constant dense<0.000000e+00> : vector<8x128xf32>
    %9 = tpu.matmul %7, %8, %cst_10 {dimension_numbers = #tpu.dot_dimension_numbers<[1], [0], [0], [1], [0, 0, 1, 1], [], []>} : vector<8x32xf32>, vector<32x128xf32>, vector<8x128xf32> -> vector<8x128xf32>
    %10 = arith.addf %6, %9 : vector<8x128xf32>
    %c0_11 = arith.constant 0 : index
    %c0_12 = arith.constant 0 : index
    %11 = vector.load %arg5[%c0_11, %c0_12] : memref<1x128xf32, #tpu.memory_space<vmem>>, vector<1x128xf32>
    %12 = vector.broadcast %11 : vector<1x128xf32> to vector<8x128xf32>
    %13 = arith.addf %10, %12 : vector<8x128xf32>
    %14 = vector.extract_strided_slice %13 {offsets = [0, 0], sizes = [8, 32], strides = [1, 1]} : vector<8x128xf32> to vector<8x32xf32>
    %15 = vector.extract_strided_slice %13 {offsets = [0, 32], sizes = [8, 32], strides = [1, 1]} : vector<8x128xf32> to vector<8x32xf32>
    %16 = vector.extract_strided_slice %13 {offsets = [0, 64], sizes = [8, 32], strides = [1, 1]} : vector<8x128xf32> to vector<8x32xf32>
    %17 = vector.extract_strided_slice %13 {offsets = [0, 96], sizes = [8, 32], strides = [1, 1]} : vector<8x128xf32> to vector<8x32xf32>
    %c0_13 = arith.constant 0 : index
    %c0_14 = arith.constant 0 : index
    %18 = vector.load %arg6[%c0_13, %c0_14] : memref<8x32xf32, #tpu.memory_space<vmem>>, vector<8x32xf32>
    %19 = arith.negf %14 : vector<8x32xf32>
    %20 = math.exp %19 : vector<8x32xf32>
    %cst_15 = arith.constant 1.000000e+00 : f32
    %21 = vector.broadcast %cst_15 : f32 to vector<8x32xf32>
    %22 = arith.addf %21, %20 : vector<8x32xf32>
    %23 = arith.divf %21, %22 : vector<8x32xf32>
    %24 = arith.mulf %23, %18 : vector<8x32xf32>
    %25 = arith.negf %15 : vector<8x32xf32>
    %26 = math.exp %25 : vector<8x32xf32>
    %cst_16 = arith.constant 1.000000e+00 : f32
    %27 = vector.broadcast %cst_16 : f32 to vector<8x32xf32>
    %28 = arith.addf %27, %26 : vector<8x32xf32>
    %29 = arith.divf %27, %28 : vector<8x32xf32>
    %30 = math.tanh %17 : vector<8x32xf32>
    %31 = arith.mulf %29, %30 : vector<8x32xf32>
    %32 = arith.addf %24, %31 : vector<8x32xf32>
    %33 = arith.negf %16 : vector<8x32xf32>
    %34 = math.exp %33 : vector<8x32xf32>
    %cst_17 = arith.constant 1.000000e+00 : f32
    %35 = vector.broadcast %cst_17 : f32 to vector<8x32xf32>
    %36 = arith.addf %35, %34 : vector<8x32xf32>
    %37 = arith.divf %35, %36 : vector<8x32xf32>
    %38 = math.tanh %32 : vector<8x32xf32>
    %39 = arith.mulf %37, %38 : vector<8x32xf32>
    %c0_18 = arith.constant 0 : index
    %c0_19 = arith.constant 0 : index
    %40 = vector.load %arg7[%c0_18, %c0_19] : memref<8x32xf32, #tpu.memory_space<vmem>>, vector<8x32xf32>
    tpu.vector_store %arg7[%c0_18, %c0_19], %39 {strides = array<i32>} : memref<8x32xf32, #tpu.memory_space<vmem>>, vector<8x32xf32>,
    %c0_20 = arith.constant 0 : index
    %c0_21 = arith.constant 0 : index
    %41 = vector.load %arg8[%c0_20, %c0_21] : memref<8x32xf32, #tpu.memory_space<vmem>>, vector<8x32xf32>
    tpu.vector_store %arg8[%c0_20, %c0_21], %32 {strides = array<i32>} : memref<8x32xf32, #tpu.memory_space<vmem>>, vector<8x32xf32>,
    return
  }
  func.func @transform_0(%arg0: i32) -> (i32, i32) {
    %c0_i32 = arith.constant 0 : i32
    %c0_i32_0 = arith.constant 0 : i32
    %c0_i32_1 = arith.constant 0 : i32
    return %c0_i32, %c0_i32_0 : i32, i32
  }
  func.func @transform_1(%arg0: i32) -> (i32, i32) {
    %c0_i32 = arith.constant 0 : i32
    %c0_i32_0 = arith.constant 0 : i32
    %c0_i32_1 = arith.constant 0 : i32
    return %c0_i32, %c0_i32_0 : i32, i32
  }
  func.func @transform_2(%arg0: i32) -> (i32, i32) {
    %c0_i32 = arith.constant 0 : i32
    %c0_i32_0 = arith.constant 0 : i32
    %c0_i32_1 = arith.constant 0 : i32
    return %c0_i32, %c0_i32_0 : i32, i32
  }
  func.func @transform_3(%arg0: i32) -> (i32, i32) {
    %c0_i32 = arith.constant 0 : i32
    %c0_i32_0 = arith.constant 0 : i32
    return %c0_i32, %arg0 : i32, i32
  }
  func.func @transform_4(%arg0: i32) -> (i32, i32) {
    %c0_i32 = arith.constant 0 : i32
    %c0_i32_0 = arith.constant 0 : i32
    return %c0_i32, %arg0 : i32, i32
  }
  func.func @transform_5(%arg0: i32) -> (i32, i32) {
    %c0_i32 = arith.constant 0 : i32
    %c0_i32_0 = arith.constant 0 : i32
    return %c0_i32, %arg0 : i32, i32
  }
  func.func @transform_6(%arg0: i32) -> (i32, i32) {
    %c0_i32 = arith.constant 0 : i32
    %c0_i32_0 = arith.constant 0 : i32
    return %c0_i32, %arg0 : i32, i32
  }
  func.func @transform_7(%arg0: i32) -> (i32, i32) {
    %c0_i32 = arith.constant 0 : i32
    %c0_i32_0 = arith.constant 0 : i32
    return %c0_i32, %arg0 : i32, i32
  }
}

</mosaic_0001>

<llo_original>
// kernel: topdown_lstm_cell.1
$region0: #{topdown_lstm_cell.1}
  #allocation0 [shape = 'u32[]', space=smem, size = 0x4, offset = 0x4, fixed_abs, tag = 'smem constant byte address 0x4 - core index']
  #allocation1 [shape = 'u32[72,128]{1,0:T(1,128)}', space=vmem, size = 0x9000, scoped, tag = 'internal scratch']
  %s0 = inlined_call_operand.hbm [shape: f32[8,32], index: 0, kind: input, shape index: {}]
  %s1 = inlined_call_operand.hbm [shape: f32[8,16], index: 1, kind: input, shape index: {}]
  %s2 = inlined_call_operand.hbm [shape: f32[8,32], index: 2, kind: input, shape index: {}]
  %s3 = inlined_call_operand.hbm [shape: f32[80,128], index: 3, kind: input, shape index: {}]
  %s4 = inlined_call_operand.vmem [shape: f32[1,128], index: 4, kind: input, shape index: {}]
  %s5 = inlined_call_operand.hbm [shape: f32[8,32], index: 5, kind: input, shape index: {}]
  %s6 = inlined_call_operand.hbm [shape: f32[8,32], index: 6, kind: output, shape index: {0}]
  %s7 = inlined_call_operand.hbm [shape: f32[8,32], index: 7, kind: output, shape index: {1}]
  %8 = xla_tuple %s6, %s7
  %s9 = sld [smem:[#allocation0]]
  $region62: #{topdown_lstm_cell.1} parent=0
    _
  %s11 = ssub.s32 1, %s9
  %s12 = scalar_select 0, %s11, %s9
  $region1: #{topdown_lstm_cell.1} parent=0
    #allocation2 [shape = 'u8[4096]{0}', space=vmem, size = 0x1000, scoped, tag = 'input window, operand 0, single buffered']
    #allocation3 [shape = 's32[1]{0}', space=sflag, size = 0x4, scoped, tag = 'scoped memory for topdown_lstm_cell.1']
    #allocation4 [shape = 's32[1]{0}', space=sflag, size = 0x4, scoped, tag = 'scoped memory for topdown_lstm_cell.1']
    #allocation5 [shape = 'u8[4096]{0}', space=vmem, size = 0x1000, scoped, tag = 'input window, operand 1, single buffered']
    #allocation6 [shape = 's32[1]{0}', space=sflag, size = 0x4, scoped, tag = 'scoped memory for topdown_lstm_cell.1']
    #allocation7 [shape = 'u8[4096]{0}', space=vmem, size = 0x1000, scoped, tag = 'input window, operand 2, single buffered']
    #allocation8 [shape = 'u8[40960]{0}', space=vmem, size = 0xa000, scoped, tag = 'input window, operand 3, single buffered']
    #allocation9 [shape = 's32[1]{0}', space=sflag, size = 0x4, scoped, tag = 'scoped memory for topdown_lstm_cell.1']
    #allocation10 [shape = 'u8[4096]{0}', space=vmem, size = 0x1000, scoped, tag = 'input window, operand 5, single buffered']
    #allocation11 [shape = 'u8[4096]{0}', space=vmem, size = 0x1000, scoped, tag = 'output window, operand 0, single buffered']
    #allocation12 [shape = 'u8[4096]{0}', space=vmem, size = 0x1000, scoped, tag = 'output window, operand 1, single buffered']
    #allocation13 [shape = 's32[1]{0}', space=sflag, size = 0x4, scoped, tag = 'scoped memory for topdown_lstm_cell.1']
    %13 = vsyncpa [#allocation3], 0
    %14 = vsyncpa [#allocation6], 0
    %15 = vsyncpa [#allocation9], 0
    %16 = vsyncpa [#allocation4], 0
    %17 = vsyncpa [#allocation13], 0
    // Predicated region
    $region2: #{topdown_lstm_cell.1} parent=1 // pred_check
      _
    $region3: #{topdown_lstm_cell.1} parent=1 // pred_check_branch
      %19 = sbr.rel (0) target = $region5
    $region4: #{topdown_lstm_cell.1} parent=1 // pred_region
      %21 = vsyncadd [#allocation3], 0
      %s23 = sshll.u32 %s0, 4
      %s24 = int_to_ptr.hbm [resolvable:$true] %s23
      %s25 = sshll.u32 [#allocation2], 4
      %s26 = int_to_ptr.vmem [resolvable:$true] %s25
      %28 = dma.hbm_to_vmem [thread:$0]  %s24, 128, %s26, [#allocation3]
    $region5: #{topdown_lstm_cell.1} parent=1 // pred_fallthru
      _
    // Predicated region
    $region6: #{topdown_lstm_cell.1} parent=1 // pred_check
      _
    $region7: #{topdown_lstm_cell.1} parent=1 // pred_check_branch
      %30 = sbr.rel (0) target = $region9
    $region8: #{topdown_lstm_cell.1} parent=1 // pred_region
      %32 = vsyncadd [#allocation6], 0
      %s34 = sshll.u32 %s1, 4
      %s35 = int_to_ptr.hbm [resolvable:$true] %s34
      %s36 = sshll.u32 [#allocation5], 4
      %s37 = int_to_ptr.vmem [resolvable:$true] %s36
      %39 = dma.hbm_to_vmem [thread:$0]  %s35, 128, %s37, [#allocation6]
    $region9: #{topdown_lstm_cell.1} parent=1 // pred_fallthru
      _
    // Predicated region
    $region10: #{topdown_lstm_cell.1} parent=1 // pred_check
      _
    $region11: #{topdown_lstm_cell.1} parent=1 // pred_check_branch
      %41 = sbr.rel (0) target = $region13
    $region12: #{topdown_lstm_cell.1} parent=1 // pred_region
      %43 = vsyncadd [#allocation6], 0
      %s45 = sshll.u32 %s2, 4
      %s46 = int_to_ptr.hbm [resolvable:$true] %s45
      %s47 = sshll.u32 [#allocation7], 4
      %s48 = int_to_ptr.vmem [resolvable:$true] %s47
      %50 = dma.hbm_to_vmem [thread:$0]  %s46, 128, %s48, [#allocation6]
    $region13: #{topdown_lstm_cell.1} parent=1 // pred_fallthru
      _
    // Predicated region
    $region14: #{topdown_lstm_cell.1} parent=1 // pred_check
      _
    $region15: #{topdown_lstm_cell.1} parent=1 // pred_check_branch
      %52 = sbr.rel (0) target = $region17
    $region16: #{topdown_lstm_cell.1} parent=1 // pred_region
      %54 = vsyncadd [#allocation9], 0
      %s55 = sshll.u32 %s3, 4
      %s56 = int_to_ptr.hbm [resolvable:$true] %s55
      %s57 = sshll.u32 [#allocation8], 4
      %s58 = int_to_ptr.vmem [resolvable:$true] %s57
      %63 = dma.hbm_to_vmem [thread:$0]  %s56, 1280, %s58, [#allocation9], 128, 128, 8
    $region17: #{topdown_lstm_cell.1} parent=1 // pred_fallthru
      _
    // Predicated region
    $region18: #{topdown_lstm_cell.1} parent=1 // pred_check
      _
    $region19: #{topdown_lstm_cell.1} parent=1 // pred_check_branch
      %65 = sbr.rel (0) target = $region21
    $region20: #{topdown_lstm_cell.1} parent=1 // pred_region
      _
    $region21: #{topdown_lstm_cell.1} parent=1 // pred_fallthru
      _
    // Predicated region
    $region22: #{topdown_lstm_cell.1} parent=1 // pred_check
      _
    $region23: #{topdown_lstm_cell.1} parent=1 // pred_check_branch
      %67 = sbr.rel (0) target = $region25
    $region24: #{topdown_lstm_cell.1} parent=1 // pred_region
      %69 = vsyncadd [#allocation9], 0
      %s71 = sshll.u32 %s5, 4
      %s72 = int_to_ptr.hbm [resolvable:$true] %s71
      %s73 = sshll.u32 [#allocation10], 4
      %s74 = int_to_ptr.vmem [resolvable:$true] %s73
      %76 = dma.hbm_to_vmem [thread:$0]  %s72, 128, %s74, [#allocation9]
    $region25: #{topdown_lstm_cell.1} parent=1 // pred_fallthru
      _
    // Predicated region
    $region26: #{topdown_lstm_cell.1} parent=1 // pred_check
      _
    $region27: #{topdown_lstm_cell.1} parent=1 // pred_check_branch
      %78 = sbr.rel (0) target = $region29
    $region28: #{topdown_lstm_cell.1} parent=1 // pred_region
      %80 = dma.done [#allocation3], 128
    $region29: #{topdown_lstm_cell.1} parent=1 // pred_fallthru
      _
    // Predicated region
    $region30: #{topdown_lstm_cell.1} parent=1 // pred_check
      _
    $region31: #{topdown_lstm_cell.1} parent=1 // pred_check_branch
      %82 = sbr.rel (0) target = $region33
    $region32: #{topdown_lstm_cell.1} parent=1 // pred_region
      %84 = dma.done [#allocation6], 128
    $region33: #{topdown_lstm_cell.1} parent=1 // pred_fallthru
      _
    // Predicated region
    $region34: #{topdown_lstm_cell.1} parent=1 // pred_check
      _
    $region35: #{topdown_lstm_cell.1} parent=1 // pred_check_branch
      %86 = sbr.rel (0) target = $region37
    $region36: #{topdown_lstm_cell.1} parent=1 // pred_region
      %88 = dma.done [#allocation6], 128
    $region37: #{topdown_lstm_cell.1} parent=1 // pred_fallthru
      _
    // Predicated region
    $region38: #{topdown_lstm_cell.1} parent=1 // pred_check
      _
    $region39: #{topdown_lstm_cell.1} parent=1 // pred_check_branch
      %90 = sbr.rel (0) target = $region41
    $region40: #{topdown_lstm_cell.1} parent=1 // pred_region
      %92 = dma.done [#allocation9], 1280
    $region41: #{topdown_lstm_cell.1} parent=1 // pred_fallthru
      _
    // Predicated region
    $region42: #{topdown_lstm_cell.1} parent=1 // pred_check
      _
    $region43: #{topdown_lstm_cell.1} parent=1 // pred_check_branch
      %94 = sbr.rel (0) target = $region45
    $region44: #{topdown_lstm_cell.1} parent=1 // pred_region
      %96 = dma.done [#allocation9], 128
    $region45: #{topdown_lstm_cell.1} parent=1 // pred_fallthru
      _
    %v97 = vld [vmem:[#allocation2] sm:$0xff]
    %v98 = vld [vmem:[#allocation8] sm:$0xff]
    %v99 = vld [vmem:[#allocation8 + $0x8] sm:$0xff]
    %v100 = vld [vmem:[#allocation8 + $0x10] sm:$0xff]
    %v101 = vld [vmem:[#allocation8 + $0x18] sm:$0xff]
    %v102 = vld [vmem:[#allocation5] sm:$0xff]
    %v103 = vld [vmem:[#allocation8 + $0x20] sm:$0xff]
    %v104 = vld [vmem:[#allocation8 + $0x28] sm:$0xff]
    %vm105 = vcmask 130048
    %v107 = vsel %vm105, %v102, 0
    %109 = vmatpush.msra.mxu0 0.0
    %110 = vmatpush.msra.mxu0 0.0
    %111 = vmatpush.msra.mxu0 0.0
    %112 = vmatpush.msra.mxu0 0.0
    %113 = vmatpush.msra.mxu0 0.0
    %114 = vmatpush.msra.mxu0 0.0
    %115 = vmatpush.msra.mxu0 0.0
    %116 = vmatpush.msra.mxu0 0.0
    %117 = vmatpush.msra.mxu0 0.0
    %118 = vmatpush.msra.mxu0 0.0
    %119 = vmatpush.msra.mxu0 0.0
    %120 = vmatpush.msra.mxu0 0.0
    %121 = vmatpush.msra.mxu0 0.0
    %122 = vmatpush.msra.mxu0 0.0
    %123 = vmatpush.msra.mxu0 %v104
    %124 = vmatpush.msra.mxu0 %v103
    %125 = vmatmul.f32.gmra.mxu0 %v107
    %v126 = vpop.f32.mrf.mxu0
    %v127 = vadd.f32 0.0, %v126
    %128 = vdwg.mxu0
    %vm129 = vcmask 261120
    %v131 = vsel %vm129, %v97, 0
    %133 = vmatpush.msra.mxu0 0.0
    %134 = vmatpush.msra.mxu0 0.0
    %135 = vmatpush.msra.mxu0 0.0
    %136 = vmatpush.msra.mxu0 0.0
    %137 = vmatpush.msra.mxu0 0.0
    %138 = vmatpush.msra.mxu0 0.0
    %139 = vmatpush.msra.mxu0 0.0
    %140 = vmatpush.msra.mxu0 0.0
    %141 = vmatpush.msra.mxu0 0.0
    %142 = vmatpush.msra.mxu0 0.0
    %143 = vmatpush.msra.mxu0 0.0
    %144 = vmatpush.msra.mxu0 0.0
    %145 = vmatpush.msra.mxu0 %v101
    %146 = vmatpush.msra.mxu0 %v100
    %147 = vmatpush.msra.mxu0 %v99
    %148 = vmatpush.msra.mxu0 %v98
    %149 = vmatmul.f32.gmra.mxu0 %v131
    %v150 = vpop.f32.mrf.mxu0
    %v151 = vadd.f32 %v127, %v150
    %152 = vdwg.mxu0
    %v153 = vld [vmem:[#allocation7] sm:$0xff]
    %v154 = vld [vmem:[#allocation8 + $0x30] sm:$0xff]
    %v155 = vld [vmem:[#allocation8 + $0x38] sm:$0xff]
    %v156 = vld [vmem:[#allocation8 + $0x40] sm:$0xff]
    %v157 = vld [vmem:[#allocation8 + $0x48] sm:$0xff]
    %v159 = vsel %vm129, %v153, 0
    %161 = vmatpush.msra.mxu0 0.0
    %162 = vmatpush.msra.mxu0 0.0
    %163 = vmatpush.msra.mxu0 0.0
    %164 = vmatpush.msra.mxu0 0.0
    %165 = vmatpush.msra.mxu0 0.0
    %166 = vmatpush.msra.mxu0 0.0
    %167 = vmatpush.msra.mxu0 0.0
    %168 = vmatpush.msra.mxu0 0.0
    %169 = vmatpush.msra.mxu0 0.0
    %170 = vmatpush.msra.mxu0 0.0
    %171 = vmatpush.msra.mxu0 0.0
    %172 = vmatpush.msra.mxu0 0.0
    %173 = vmatpush.msra.mxu0 %v157
    %174 = vmatpush.msra.mxu0 %v156
    %175 = vmatpush.msra.mxu0 %v155
    %176 = vmatpush.msra.mxu0 %v154
    %177 = vmatmul.f32.gmra.mxu0 %v159
    %v178 = vpop.f32.mrf.mxu0
    %v179 = vadd.f32 0.0, %v178
    %180 = vdwg.mxu0
    %v181 = vadd.f32 %v151, %v179
    %v182 = vld [vmem:[%s4] sm:$0x1]
    %v184 = vperm.slane %v182, 0
    %v186 = vadd.f32 %v181, %v184
    %v187 = vld [vmem:[#allocation10] sm:$0xff]
    %v188 = vxor.u32 %v186, 2147483648
    %v189 = vmul.f32 %v188, 1.442695
    %v190 = vpow.pop %v189
    %v191 = vadd.f32 %v190, 1.0
    %v192 = vrcp.pop %v191
    %v193 = vmul.f32 %v191, %v192
    %v194 = vsub.f32 1.0, %v193
    %v195 = vmul.f32 %v192, %v194
    %v196 = vadd.f32 %v192, %v195
    %vm197 = vweird.f32 %v191
    %vm198 = vweird.f32 %v192
    %vm199 = vmor %vm197, %vm198
    %v200 = vsel %vm199, %v192, %v196
    %v201 = vand.u32 2147483647, %v191
    %vm202 = vcmp.eq.f32.partialorder %v201, 8.507059e+37
    %v203 = vand.u32 %v191, 2147483648
    %v204 = vor.u32 1.1754944e-38, %v203
    %v205 = vsel %vm202, %v204, %v200
    %v206 = vmul.f32 1.0, %v205
    %v207 = vmul.f32 %v206, %v187
    %v208 = vtanh.pop %v186
    %210 = vrot.lane.b32.xlu0 %v208, 64
    %v211 = vpop.permute.xlu0 %210
    %v213 = vmul.f32 %v206, %v211
    %215 = vrot.lane.b32.xlu0 %v213, 96
    %v216 = vpop.permute.xlu0 %215
    %v218 = vadd.f32 %v207, %v216
    %v219 = vtanh.pop %v218
    %221 = vrot.lane.b32.xlu0 %v219, 64
    %v222 = vpop.permute.xlu0 %221
    %v224 = vmul.f32 %v206, %v222
    %226 = vrot.lane.b32.xlu0 %v224, 64
    %v227 = vpop.permute.xlu0 %226
    %229 = vst.msk [vmem:[#allocation11] sm:$0xff] %vm129, %v227
    %230 = vst.msk [vmem:[#allocation12] sm:$0xff] %vm129, %v218
    // Predicated region
    $region46: #{topdown_lstm_cell.1} parent=1 // pred_check
      _
    $region47: #{topdown_lstm_cell.1} parent=1 // pred_check_branch
      %232 = sbr.rel (0) target = $region49
    $region48: #{topdown_lstm_cell.1} parent=1 // pred_region
      %234 = vsyncadd [#allocation4], 0
      %s236 = sshll.u32 [#allocation11], 4
      %s237 = int_to_ptr.vmem [resolvable:$true] %s236
      %s238 = sshll.u32 %s6, 4
      %s239 = int_to_ptr.hbm [resolvable:$true] %s238
      %241 = dma.vmem_to_hbm [thread:$0]  %s237, 128, %s239, [#allocation4]
    $region49: #{topdown_lstm_cell.1} parent=1 // pred_fallthru
      _
    // Predicated region
    $region50: #{topdown_lstm_cell.1} parent=1 // pred_check
      _
    $region51: #{topdown_lstm_cell.1} parent=1 // pred_check_branch
      %243 = sbr.rel (0) target = $region53
    $region52: #{topdown_lstm_cell.1} parent=1 // pred_region
      %245 = vsyncadd [#allocation13], 0
      %s247 = sshll.u32 [#allocation12], 4
      %s248 = int_to_ptr.vmem [resolvable:$true] %s247
      %s249 = sshll.u32 %s7, 4
      %s250 = int_to_ptr.hbm [resolvable:$true] %s249
      %252 = dma.vmem_to_hbm [thread:$0]  %s248, 128, %s250, [#allocation13]
    $region53: #{topdown_lstm_cell.1} parent=1 // pred_fallthru
      _
    // Predicated region
    $region54: #{topdown_lstm_cell.1} parent=1 // pred_check
      _
    $region55: #{topdown_lstm_cell.1} parent=1 // pred_check_branch
      %254 = sbr.rel (0) target = $region57
    $region56: #{topdown_lstm_cell.1} parent=1 // pred_region
      %256 = dma.done [#allocation4], 128
    $region57: #{topdown_lstm_cell.1} parent=1 // pred_fallthru
      _
    // Predicated region
    $region58: #{topdown_lstm_cell.1} parent=1 // pred_check
      _
    $region59: #{topdown_lstm_cell.1} parent=1 // pred_check_branch
      %258 = sbr.rel (0) target = $region61
    $region60: #{topdown_lstm_cell.1} parent=1 // pred_region
      %260 = dma.done [#allocation13], 128
    $region61: #{topdown_lstm_cell.1} parent=1 // pred_fallthru
      _
    %261 = vsyncpa [#allocation3], 1
    %262 = vsyncpa [#allocation6], 1
    %263 = vsyncpa [#allocation9], 1
    %264 = vsyncpa [#allocation4], 1
    %265 = vsyncpa [#allocation13], 1

</llo_original>
